<compile_context>
chip_gen: v6e
topology: v6e:2x2x1
jax: 0.10.0
libtpu: 0.0.40
codegen_flags: <defaults>
</compile_context>

<pallas_src>
import jax
import jax.numpy as jnp
from jax import lax
from jax.experimental import pallas as pl
from jax.experimental.pallas import tpu as pltpu


def _round_up(x, m):
    return ((x + m - 1) // m) * m


def _make_kernel(v_actual, v_block, needs_mask):
    def kernel(x_ref, o_ref, m_sc, s_sc, min_sc):
        # x_ref  : (TR, TV)  logits tile, rows = flattened (batch, seq)
        # o_ref  : (TR, 1)   per-row max_nll = logsumexp(x) - min(x)
        # m_sc   : (TR, 1)   running max over vocab       (online LSE)
        # s_sc   : (TR, 1)   running sum of exp(x - max)  (online LSE)
        # min_sc : (TR, 1)   running min over vocab
        v_idx = pl.program_id(1)

        @pl.when(v_idx == 0)
        def _():
            m_sc[...] = jnp.full_like(m_sc, -jnp.inf)
            s_sc[...] = jnp.zeros_like(s_sc)
            min_sc[...] = jnp.full_like(min_sc, jnp.inf)

        x = x_ref[...].astype(jnp.float32)                        # (TR, TV)

        if needs_mask:
            col = v_idx * v_block + lax.broadcasted_iota(jnp.int32, x.shape, 1)
            valid = col < v_actual
            x_for_max = jnp.where(valid, x, -jnp.inf)
            x_for_min = jnp.where(valid, x, jnp.inf)
        else:
            valid = None
            x_for_max = x
            x_for_min = x

        tile_max = jnp.max(x_for_max, axis=-1, keepdims=True)     # (TR, 1)
        m_old = m_sc[...]
        m_new = jnp.maximum(m_old, tile_max)

        e = jnp.exp(x - m_new)                                    # (TR, TV)
        if needs_mask:
            e = jnp.where(valid, e, 0.0)

        s_sc[...] = s_sc[...] * jnp.exp(m_old - m_new) + jnp.sum(
            e, axis=-1, keepdims=True)
        m_sc[...] = m_new
        min_sc[...] = jnp.minimum(
            min_sc[...], jnp.min(x_for_min, axis=-1, keepdims=True))

        @pl.when(v_idx == pl.num_programs(1) - 1)
        def _():
            lse = m_sc[...] + jnp.log(s_sc[...])                  # (TR, 1)
            o_ref[...] = (lse - min_sc[...]).astype(o_ref.dtype)  # max_nll

    return kernel


def _row_max_nll(x2, *, row_tile=512, v_tile=2048,
                 vmem_limit_bytes=48 * 1024 * 1024):
    """x2: (BS, V) logits. Returns (BS,) f32 of max_v(-log_softmax(x2, axis=-1))."""
    bs, v = x2.shape

    # Row tiling: multiple of 8 sublanes; pad rows with zeros (never gathered).
    tr = min(row_tile, _round_up(bs, 8))
    bs_pad = _round_up(bs, tr)

    # Vocab tiling: full-V block when it fits, else 128-multiple chunks with a
    # masked partial last tile.
    if v <= v_tile:
        tv = v
        v_pad = v
    else:
        tv = v_tile
        v_pad = _round_up(v, tv)
    needs_mask = (v_pad != v)

    if bs_pad != bs or v_pad != v:
        x2 = jnp.pad(x2, ((0, bs_pad - bs), (0, v_pad - v)))

    grid = (bs_pad // tr, v_pad // tv)

    out = pl.pallas_call(
        _make_kernel(v, tv, needs_mask),
        out_shape=jax.ShapeDtypeStruct((bs_pad, 1), jnp.float32),
        grid_spec=pltpu.PrefetchScalarGridSpec(
            num_scalar_prefetch=0,
            grid=grid,
            in_specs=[pl.BlockSpec((tr, tv), lambda r, vi: (r, vi))],
            out_specs=pl.BlockSpec((tr, 1), lambda r, vi: (r, 0)),
            scratch_shapes=[pltpu.VMEM((tr, 1), jnp.float32)] * 3,
        ),
        compiler_params=pltpu.CompilerParams(
            dimension_semantics=("parallel", "arbitrary"),
            vmem_limit_bytes=vmem_limit_bytes,
        ),
    )(x2)
    return out[:bs, 0]


def maxpool_ce_loss(inp, target, masked_weights, *, row_tile=512, v_tile=2048):
    """inp: (B, S, V); target: (B, T) int indices into S; masked_weights: (B, T)."""
    B, S, V = inp.shape
    x2 = inp.reshape(B * S, V)  # keep wire dtype; upcast to f32 inside the kernel
    max_nll = _row_max_nll(x2, row_tile=row_tile, v_tile=v_tile).reshape(B, S)
    nll_loss = jnp.take_along_axis(max_nll, target.astype(jnp.int32), axis=1)
    return jnp.mean(nll_loss * masked_weights.astype(jnp.float32))


def maxpool_ce_loss_ref(inp, target, masked_weights):
    """Pure-JAX reference matching the PyTorch forward."""
    nll = -jax.nn.log_softmax(inp.astype(jnp.float32), axis=2)
    max_nll = jnp.max(nll, axis=2)                              # (B, S)
    nll_loss = jnp.take_along_axis(max_nll, target, axis=1)     # (B, T)
    return jnp.mean(nll_loss * masked_weights)


if __name__ == "__main__":
    key = jax.random.PRNGKey(0)

    # Case 1: module-implied small shapes (single grid step).
    B, S, V, T = 2, 8, 32, 8
    k1, k2, k3, k4 = jax.random.split(key, 4)
    inp = jax.random.normal(k1, (B, S, V), dtype=jnp.float32)
    target = jax.random.randint(k2, (B, T), 0, S, dtype=jnp.int32)
    masked_weights = jax.random.uniform(k3, (B, T), dtype=jnp.float32)

    loss = jax.block_until_ready(maxpool_ce_loss(inp, target, masked_weights))
    ref = maxpool_ce_loss_ref(inp, target, masked_weights)
    assert jnp.allclose(loss, ref, atol=1e-5, rtol=1e-5), (loss, ref)

    # Case 2: force a multi-tile grid (row tiling + online LSE over vocab tiles
    # + masked partial last vocab tile) to exercise the streaming path.
    B2, S2, V2, T2 = 2, 16, 200, 8
    k5, k6, k7 = jax.random.split(k4, 3)
    inp2 = jax.random.normal(k5, (B2, S2, V2), dtype=jnp.float32)
    target2 = jax.random.randint(k6, (B2, T2), 0, S2, dtype=jnp.int32)
    weights2 = jax.random.uniform(k7, (B2, T2), dtype=jnp.float32)

    loss2 = jax.block_until_ready(
        maxpool_ce_loss(inp2, target2, weights2, row_tile=8, v_tile=128))
    ref2 = maxpool_ce_loss_ref(inp2, target2, weights2)
    assert jnp.allclose(loss2, ref2, atol=1e-5, rtol=1e-5), (loss2, ref2)

    print("KERNEL_OK")
</pallas_src>

<mosaic_0001>
module attributes {stable_mosaic.version = 11 : i64} {
  func.func @kernel(%arg0: i32, %arg1: i32, %arg2: memref<16x32xf32, #tpu.memory_space<vmem>>, %arg3: memref<16x1xf32, #tpu.memory_space<vmem>>, %arg4: memref<16x1xf32, #tpu.memory_space<vmem>>, %arg5: memref<16x1xf32, #tpu.memory_space<vmem>>, %arg6: memref<16x1xf32, #tpu.memory_space<vmem>>) attributes {dimension_semantics = [#tpu.dimension_semantics<parallel>, #tpu.dimension_semantics<arbitrary>], iteration_bounds = array<i64: 1, 1>, scalar_prefetch = 0 : i64, scratch_operands = 3 : i64, tpu.core_type = #tpu.core_type<tc>, window_params = [{transform_indices = @transform_0, window_bounds = array<i64: 16, 32>}, {transform_indices = @transform_1, window_bounds = array<i64: 16, 1>}]} {
    %c0_i32 = arith.constant 0 : i32
    %0 = arith.cmpi eq, %arg1, %c0_i32 : i32
    %1 = arith.extui %0 : i1 to i32
    %c0_i32_0 = arith.constant 0 : i32
    %2 = arith.cmpi ne, %1, %c0_i32_0 : i32
    scf.if %2 {
      %cst_18 = arith.constant 0xFF800000 : f32
      %28 = vector.broadcast %cst_18 : f32 to vector<16x1xf32>
      %c0_19 = arith.constant 0 : index
      %c0_20 = arith.constant 0 : index
      %29 = vector.load %arg4[%c0_19, %c0_20] : memref<16x1xf32, #tpu.memory_space<vmem>>, vector<16x1xf32>
      tpu.vector_store %arg4[%c0_19, %c0_20], %28 {strides = array<i32>} : memref<16x1xf32, #tpu.memory_space<vmem>>, vector<16x1xf32>,
      %cst_21 = arith.constant 0.000000e+00 : f32
      %30 = vector.broadcast %cst_21 : f32 to vector<16x1xf32>
      %c0_22 = arith.constant 0 : index
      %c0_23 = arith.constant 0 : index
      %31 = vector.load %arg5[%c0_22, %c0_23] : memref<16x1xf32, #tpu.memory_space<vmem>>, vector<16x1xf32>
      tpu.vector_store %arg5[%c0_22, %c0_23], %30 {strides = array<i32>} : memref<16x1xf32, #tpu.memory_space<vmem>>, vector<16x1xf32>,
      %cst_24 = arith.constant 0x7F800000 : f32
      %32 = vector.broadcast %cst_24 : f32 to vector<16x1xf32>
      %c0_25 = arith.constant 0 : index
      %c0_26 = arith.constant 0 : index
      %33 = vector.load %arg6[%c0_25, %c0_26] : memref<16x1xf32, #tpu.memory_space<vmem>>, vector<16x1xf32>
      tpu.vector_store %arg6[%c0_25, %c0_26], %32 {strides = array<i32>} : memref<16x1xf32, #tpu.memory_space<vmem>>, vector<16x1xf32>,
    } else {
    }
    %c0 = arith.constant 0 : index
    %c0_1 = arith.constant 0 : index
    %3 = vector.load %arg2[%c0, %c0_1] : memref<16x32xf32, #tpu.memory_space<vmem>>, vector<16x32xf32>
    %cst = arith.constant dense<0xFF800000> : vector<16xf32>
    %4 = vector.multi_reduction <maximumf>, %3, %cst [1] : vector<16x32xf32> to vector<16xf32>
    %5 = vector.shape_cast %4 : vector<16xf32> to vector<16x1xf32>
    %c0_2 = arith.constant 0 : index
    %c0_3 = arith.constant 0 : index
    %6 = vector.load %arg4[%c0_2, %c0_3] : memref<16x1xf32, #tpu.memory_space<vmem>>, vector<16x1xf32>
    %7 = arith.maximumf %6, %5 : vector<16x1xf32>
    %8 = vector.broadcast %7 : vector<16x1xf32> to vector<16x32xf32>
    %9 = arith.subf %3, %8 : vector<16x32xf32>
    %10 = math.exp %9 : vector<16x32xf32>
    %c0_4 = arith.constant 0 : index
    %c0_5 = arith.constant 0 : index
    %11 = vector.load %arg5[%c0_4, %c0_5] : memref<16x1xf32, #tpu.memory_space<vmem>>, vector<16x1xf32>
    %12 = arith.subf %6, %7 : vector<16x1xf32>
    %13 = math.exp %12 : vector<16x1xf32>
    %14 = arith.mulf %11, %13 : vector<16x1xf32>
    %cst_6 = arith.constant dense<0.000000e+00> : vector<16xf32>
    %15 = vector.multi_reduction <add>, %10, %cst_6 [1] : vector<16x32xf32> to vector<16xf32>
    %16 = vector.shape_cast %15 : vector<16xf32> to vector<16x1xf32>
    %17 = arith.addf %14, %16 : vector<16x1xf32>
    %c0_7 = arith.constant 0 : index
    %c0_8 = arith.constant 0 : index
    %18 = vector.load %arg5[%c0_7, %c0_8] : memref<16x1xf32, #tpu.memory_space<vmem>>, vector<16x1xf32>
    tpu.vector_store %arg5[%c0_7, %c0_8], %17 {strides = array<i32>} : memref<16x1xf32, #tpu.memory_space<vmem>>, vector<16x1xf32>,
    %c0_9 = arith.constant 0 : index
    %c0_10 = arith.constant 0 : index
    %19 = vector.load %arg4[%c0_9, %c0_10] : memref<16x1xf32, #tpu.memory_space<vmem>>, vector<16x1xf32>
    tpu.vector_store %arg4[%c0_9, %c0_10], %7 {strides = array<i32>} : memref<16x1xf32, #tpu.memory_space<vmem>>, vector<16x1xf32>,
    %c0_11 = arith.constant 0 : index
    %c0_12 = arith.constant 0 : index
    %20 = vector.load %arg6[%c0_11, %c0_12] : memref<16x1xf32, #tpu.memory_space<vmem>>, vector<16x1xf32>
    %cst_13 = arith.constant dense<0x7F800000> : vector<16xf32>
    %21 = vector.multi_reduction <minimumf>, %3, %cst_13 [1] : vector<16x32xf32> to vector<16xf32>
    %22 = vector.shape_cast %21 : vector<16xf32> to vector<16x1xf32>
    %23 = arith.minimumf %20, %22 : vector<16x1xf32>
    %c0_14 = arith.constant 0 : index
    %c0_15 = arith.constant 0 : index
    %24 = vector.load %arg6[%c0_14, %c0_15] : memref<16x1xf32, #tpu.memory_space<vmem>>, vector<16x1xf32>
    tpu.vector_store %arg6[%c0_14, %c0_15], %23 {strides = array<i32>} : memref<16x1xf32, #tpu.memory_space<vmem>>, vector<16x1xf32>,
    %c0_i32_16 = arith.constant 0 : i32
    %25 = arith.cmpi eq, %arg1, %c0_i32_16 : i32
    %26 = arith.extui %25 : i1 to i32
    %c0_i32_17 = arith.constant 0 : i32
    %27 = arith.cmpi ne, %26, %c0_i32_17 : i32
    scf.if %27 {
      %c0_18 = arith.constant 0 : index
      %c0_19 = arith.constant 0 : index
      %28 = vector.load %arg4[%c0_18, %c0_19] : memref<16x1xf32, #tpu.memory_space<vmem>>, vector<16x1xf32>
      %c0_20 = arith.constant 0 : index
      %c0_21 = arith.constant 0 : index
      %29 = vector.load %arg5[%c0_20, %c0_21] : memref<16x1xf32, #tpu.memory_space<vmem>>, vector<16x1xf32>
      %30 = math.log %29 : vector<16x1xf32>
      %31 = arith.addf %28, %30 : vector<16x1xf32>
      %c0_22 = arith.constant 0 : index
      %c0_23 = arith.constant 0 : index
      %32 = vector.load %arg6[%c0_22, %c0_23] : memref<16x1xf32, #tpu.memory_space<vmem>>, vector<16x1xf32>
      %33 = arith.subf %31, %32 : vector<16x1xf32>
      %c0_24 = arith.constant 0 : index
      %c0_25 = arith.constant 0 : index
      %34 = vector.load %arg3[%c0_24, %c0_25] : memref<16x1xf32, #tpu.memory_space<vmem>>, vector<16x1xf32>
      tpu.vector_store %arg3[%c0_24, %c0_25], %33 {strides = array<i32>} : memref<16x1xf32, #tpu.memory_space<vmem>>, vector<16x1xf32>,
    } else {
    }
    return
  }
  func.func @transform_0(%arg0: i32, %arg1: i32) -> (i32, i32) {
    %c0_i32 = arith.constant 0 : i32
    return %arg0, %arg1 : i32, i32
  }
  func.func @transform_1(%arg0: i32, %arg1: i32) -> (i32, i32) {
    %c0_i32 = arith.constant 0 : i32
    %c0_i32_0 = arith.constant 0 : i32
    return %arg0, %c0_i32 : i32, i32
  }
}

</mosaic_0001>

<llo_original>
// kernel: tpu_custom_call.1
$region0: #{tpu_custom_call.1}
  #allocation0 [shape = 'u32[]', space=smem, size = 0x4, offset = 0x4, fixed_abs, tag = 'smem constant byte address 0x4 - core index']
  #allocation1 [shape = 'u32[144,128]{1,0:T(1,128)}', space=vmem, size = 0x12000, scoped, tag = 'internal scratch']
  #allocation2 [shape = 'f32[16,1]{1,0:T(8,128)}', space=vmem, size = 0x2000, scoped, tag = 'scratch operand']
  #allocation3 [shape = 'f32[16,1]{1,0:T(8,128)}', space=vmem, size = 0x2000, scoped, tag = 'scratch operand']
  #allocation4 [shape = 'f32[16,1]{1,0:T(8,128)}', space=vmem, size = 0x2000, scoped, tag = 'scratch operand']
  %s0 = inlined_call_operand.hbm [shape: f32[16,32], index: 0, kind: input, shape index: {}]
  %s1 = inlined_call_operand.vmem [shape: f32[16,1], index: 1, kind: output, shape index: {}]
  %s2 = sld [smem:[#allocation0]]
  $region26: #{tpu_custom_call.1} parent=0
    _
  %s4 = ssub.s32 1, %s2
  %s5 = scalar_select 0, %s4, %s2
  $region1: #{tpu_custom_call.1} parent=0
    #allocation5 [shape = 'u8[8192]{0}', space=vmem, size = 0x2000, scoped, tag = 'input window, operand 0, single buffered']
    #allocation6 [shape = 's32[1]{0}', space=sflag, size = 0x4, scoped, tag = 'scoped memory for tpu_custom_call.1']
    %6 = vsyncpa [#allocation6], 0
    // Predicated region
    $region2: #{tpu_custom_call.1} parent=1 // pred_check
      _
    $region3: #{tpu_custom_call.1} parent=1 // pred_check_branch
      %8 = sbr.rel (0) target = $region5
    $region4: #{tpu_custom_call.1} parent=1 // pred_region
      %s10 = ssub.s32 256, 256
      %11 = vsyncadd [#allocation6], %s10
      %s12 = sshll.u32 [#allocation5], 4
      %s13 = int_to_ptr.vmem [resolvable:$true] %s12
      %18 = dma.hbm_to_vmem [thread:$0]  %s0, 256, %s13, [#allocation6], 128, 128, 8
    $region5: #{tpu_custom_call.1} parent=1 // pred_fallthru
      _
    // Predicated region
    $region6: #{tpu_custom_call.1} parent=1 // pred_check
      _
    $region7: #{tpu_custom_call.1} parent=1 // pred_check_branch
      %20 = sbr.rel (0) target = $region9
    $region8: #{tpu_custom_call.1} parent=1 // pred_region
      %21 = dma.done [#allocation6], 256
    $region9: #{tpu_custom_call.1} parent=1 // pred_fallthru
      _
    %p22 = scmp.eq.s32.totalorder 0, 0
    // Predicated region
    $region10: #{tpu_custom_call.1} parent=1 // pred_check
      %p23 = pneg %p22
    $region11: #{tpu_custom_call.1} parent=1 // pred_check_branch
      %25 = sbr.rel (%p23) target = $region13
    $region12: #{tpu_custom_call.1} parent=1 // pred_region
      %vm26 = vcmask 7168
      %27 = vst.msk [vmem:[#allocation2] sm:$0xff] %vm26, -inf
      %28 = vst.msk [vmem:[#allocation2 + $0x8] sm:$0xff] %vm26, -inf
      %29 = vst.msk [vmem:[#allocation3] sm:$0xff] %vm26, 0.0
      %30 = vst.msk [vmem:[#allocation3 + $0x8] sm:$0xff] %vm26, 0.0
      %31 = vst.msk [vmem:[#allocation4] sm:$0xff] %vm26, inf
      %32 = vst.msk [vmem:[#allocation4 + $0x8] sm:$0xff] %vm26, inf
    $region13: #{tpu_custom_call.1} parent=1 // pred_fallthru
      _
    %v33 = vld [vmem:[#allocation5] sm:$0xff]
    %v34 = vld [vmem:[#allocation5 + $0x8] sm:$0xff]
    %vm35 = vcmask 261120
    %v36 = vsel %vm35, %v33, -inf
    %37 = vmax.xlane.f32.xlu0 %v36
    %v38 = vpop.xlane.xlu0 %37
    %v39 = vsel %vm35, %v34, -inf
    %40 = vmax.xlane.f32.xlu0 %v39
    %v41 = vpop.xlane.xlu0 %40
    %v42 = vld [vmem:[#allocation2] sm:$0xff]
    %v43 = vld [vmem:[#allocation2 + $0x8] sm:$0xff]
    %v44 = vmax.f32 %v42, %v38
    %v45 = vmax.f32 %v43, %v41
    %47 = vset.pattern.permute.xlu0 0
    %48 = vperm.xlu0 %47, %v44
    %v49 = vpop.permute.xlu0 %48
    %52 = vset.pattern.permute.xlu0 0
    %53 = vperm.xlu0 %52, %v45
    %v54 = vpop.permute.xlu0 %53
    %v56 = vsub.f32 %v33, %v49
    %v57 = vsub.f32 %v34, %v54
    %v58 = vmul.f32 %v56, 1.442695
    %v59 = vpow.pop %v58
    %v60 = vmul.f32 %v57, 1.442695
    %v61 = vpow.pop %v60
    %v62 = vld [vmem:[#allocation3] sm:$0xff]
    %v63 = vld [vmem:[#allocation3 + $0x8] sm:$0xff]
    %v64 = vsub.f32 %v42, %v44
    %v65 = vsub.f32 %v43, %v45
    %v66 = vmul.f32 %v64, 1.442695
    %v67 = vpow.pop %v66
    %v68 = vmul.f32 %v65, 1.442695
    %v69 = vpow.pop %v68
    %v70 = vmul.f32 %v62, %v67
    %v71 = vmul.f32 %v63, %v69
    %v72 = vsel %vm35, %v59, 0.0
    %73 = vadd.xlane.f32.xlu0 %v72
    %v74 = vpop.xlane.xlu0 %73
    %v75 = vsel %vm35, %v61, 0.0
    %76 = vadd.xlane.f32.xlu0 %v75
    %v77 = vpop.xlane.xlu0 %76
    %v78 = vadd.f32 %v70, %v74
    %v79 = vadd.f32 %v71, %v77
    %vm80 = vcmask 7168
    %81 = vst.msk [vmem:[#allocation3] sm:$0xff] %vm80, %v78
    %82 = vst.msk [vmem:[#allocation3 + $0x8] sm:$0xff] %vm80, %v79
    %83 = vst.msk [vmem:[#allocation2] sm:$0xff] %vm80, %v44
    %84 = vst.msk [vmem:[#allocation2 + $0x8] sm:$0xff] %vm80, %v45
    %v85 = vld [vmem:[#allocation4] sm:$0xff]
    %v86 = vld [vmem:[#allocation4 + $0x8] sm:$0xff]
    %v87 = vsel %vm35, %v33, inf
    %88 = vmin.xlane.f32.xlu0 %v87
    %v89 = vpop.xlane.xlu0 %88
    %v90 = vsel %vm35, %v34, inf
    %91 = vmin.xlane.f32.xlu0 %v90
    %v92 = vpop.xlane.xlu0 %91
    %v93 = vmin.f32 %v85, %v89
    %v94 = vmin.f32 %v86, %v92
    %95 = vst.msk [vmem:[#allocation4] sm:$0xff] %vm80, %v93
    %96 = vst.msk [vmem:[#allocation4 + $0x8] sm:$0xff] %vm80, %v94
    // Predicated region
    $region14: #{tpu_custom_call.1} parent=1 // pred_check
      %p97 = pneg %p22
    $region15: #{tpu_custom_call.1} parent=1 // pred_check_branch
      %99 = sbr.rel (%p97) target = $region17
    $region16: #{tpu_custom_call.1} parent=1 // pred_region
      %v100 = vld [vmem:[#allocation2] sm:$0xff]
      %v101 = vld [vmem:[#allocation2 + $0x8] sm:$0xff]
      %v102 = vld [vmem:[#allocation3] sm:$0xff]
      %v103 = vld [vmem:[#allocation3 + $0x8] sm:$0xff]
      %v104 = vlog2.pop %v102
      %v105 = vmul.f32 %v104, 0.6931472
      %v106 = vlog2.pop %v103
      %v107 = vmul.f32 %v106, 0.6931472
      %v108 = vadd.f32 %v100, %v105
      %v109 = vadd.f32 %v101, %v107
      %v110 = vld [vmem:[#allocation4] sm:$0xff]
      %v111 = vld [vmem:[#allocation4 + $0x8] sm:$0xff]
      %v112 = vsub.f32 %v108, %v110
      %v113 = vsub.f32 %v109, %v111
      %114 = vst.msk [vmem:[%s1] sm:$0xff] %vm80, %v112
      %115 = vst.msk [vmem:[%s1 + $0x8] sm:$0xff] %vm80, %v113
    $region17: #{tpu_custom_call.1} parent=1 // pred_fallthru
      _
    // Predicated region
    $region18: #{tpu_custom_call.1} parent=1 // pred_check
      _
    $region19: #{tpu_custom_call.1} parent=1 // pred_check_branch
      %117 = sbr.rel (0) target = $region21
    $region20: #{tpu_custom_call.1} parent=1 // pred_region
      _
    $region21: #{tpu_custom_call.1} parent=1 // pred_fallthru
      _
    // Predicated region
    $region22: #{tpu_custom_call.1} parent=1 // pred_check
      _
    $region23: #{tpu_custom_call.1} parent=1 // pred_check_branch
      %119 = sbr.rel (0) target = $region25
    $region24: #{tpu_custom_call.1} parent=1 // pred_region
      _
    $region25: #{tpu_custom_call.1} parent=1 // pred_fallthru
      _
    %120 = vsyncpa [#allocation6], 1

</llo_original>
